<compile_context>
chip_gen: v7x
topology: tpu7x:2x2x1
jax: 0.10.0
libtpu: 0.0.40
codegen_flags: <defaults>
</compile_context>

<pallas_src>
import functools

import jax
import jax.numpy as jnp
from jax.experimental import pallas as pl
from jax.experimental.pallas import tpu as pltpu


def _round_up(a, b):
    return (a + b - 1) // b * b


# ----------------------------------------------------------------------------- kernel
def _ffn_kernel(x_ref, w1_ref, b1_ref, w2_ref, b2_ref, o_ref, acc_ref):
    # x_ref:  (bm, d_model)        w1_ref: (d_model, bh)   b1_ref: (1, bh)
    # w2_ref: (bh, d_model)        b2_ref: (1, d_model)
    # o_ref:  (bm, d_model)        acc_ref: (bm, d_model) f32 scratch
    k = pl.program_id(1)

    @pl.when(k == 0)
    def _init():
        acc_ref[...] = jnp.zeros_like(acc_ref)

    x = x_ref[...]
    # First linear (f32 accumulation on the MXU) + bias (f32) + ReLU.
    h = jnp.dot(x, w1_ref[...], preferred_element_type=jnp.float32) + b1_ref[...]
    h = jnp.maximum(h, 0.0)
    # Dropout: eval mode -> identity (no-op).
    # Second linear: partial contraction over this hidden slab, accumulate f32.
    acc_ref[...] += jnp.dot(h.astype(x.dtype), w2_ref[...],
                            preferred_element_type=jnp.float32)

    @pl.when(k == pl.num_programs(1) - 1)
    def _finalize():
        o_ref[...] = (acc_ref[...] + b2_ref[...]).astype(o_ref.dtype)


# ------------------------------------------------------------------- chip-aware tiling
# (block_m, block_h, vmem_limit_cap_bytes)
_TILE_DEFAULTS = {
    "v5e": (256, 512, 100 * 1024 * 1024),   # ~240 FLOPs/byte crossover; 128 MiB VMEM
    "v5p": (512, 512, 100 * 1024 * 1024),
    "v6e": (1024, 512, 100 * 1024 * 1024),  # ~650 FLOPs/byte crossover; 128 MiB VMEM
    "v7x": (512, 256, 48 * 1024 * 1024),    # ~310 FLOPs/byte crossover; 64 MiB VMEM
    "unknown": (512, 512, 64 * 1024 * 1024),
}


def _chip_generation():
    try:
        kind = jax.devices()[0].device_kind.lower()
    except Exception:
        return "unknown"
    if "v5 lite" in kind or "v5e" in kind or "v5lite" in kind:
        return "v5e"
    if "v5p" in kind or "v5 p" in kind:
        return "v5p"
    if "v6" in kind:
        return "v6e"
    if "v7" in kind or "7x" in kind:
        return "v7x"
    return "unknown"


# --------------------------------------------------------------- one-time param setup
def prepare_params(w1_t, b1, w2_t, b2, *, block_h, compute_dtype=jnp.bfloat16):
    """One-time weight preparation (do NOT call per forward pass).

    Casts weights to the MXU compute dtype and pads the hidden dim to a
    multiple of block_h, so the jitted apply path never rewrites the weights.
    w1_t: (d_model, hidden), w2_t: (hidden, d_model) — pre-transposed so the
    kernel computes x @ W1 + b1 (matching torch's x @ W.T + b).
    """
    d_model, hidden = w1_t.shape
    hidden_pad = hidden if hidden <= block_h else _round_up(hidden, block_h)
    cdt = compute_dtype

    w1c = w1_t.astype(cdt)
    w2c = w2_t.astype(cdt)
    b1_2d = b1.reshape(1, hidden).astype(jnp.float32)
    b2_2d = b2.reshape(1, d_model).astype(jnp.float32)
    if hidden_pad != hidden:
        # Zero-padded hidden units contribute relu(0 + 0) @ 0 == 0: exact.
        w1c = jnp.pad(w1c, ((0, 0), (0, hidden_pad - hidden)))
        b1_2d = jnp.pad(b1_2d, ((0, 0), (0, hidden_pad - hidden)))
        w2c = jnp.pad(w2c, ((0, hidden_pad - hidden), (0, 0)))
    return w1c, b1_2d, w2c, b2_2d


# ------------------------------------------------------------------------- apply path
@functools.partial(jax.jit,
                   static_argnames=("block_m", "block_h", "vmem_cap_bytes"))
def apply_feed_forward(x, w1c, b1_2d, w2c, b2_2d, *, block_m, block_h,
                       vmem_cap_bytes):
    """Run the FFN kernel on prepared (cast + padded) params.

    x: (batch, seq, d_model). Weights come from prepare_params().
    """
    batch, seq, d_model = x.shape
    hidden_pad = w1c.shape[1]
    cdt = w1c.dtype
    n = batch * seq

    w_item = jnp.dtype(cdt).itemsize
    o_item = jnp.dtype(x.dtype).itemsize
    row_mult = 16 if w_item < 4 else 8  # bf16 packs 16 rows / sublane group

    bm = min(_round_up(block_m, row_mult), _round_up(n, row_mult))
    n_pad = _round_up(n, bm)
    bh = min(block_h, hidden_pad)

    x2d = x.reshape(n, d_model).astype(cdt)
    if n_pad != n:
        x2d = jnp.pad(x2d, ((0, n_pad - n), (0, 0)))

    grid = (n_pad // bm, hidden_pad // bh)
    n_i_blocks = grid[0]

    # Weights are re-streamed once per row tile -> count them n_i_blocks times.
    cost = pl.CostEstimate(
        flops=4 * n_pad * d_model * hidden_pad,       # two matmuls, 2*M*N*K each
        transcendentals=0,
        bytes_accessed=(n_pad * d_model * w_item                        # x in
                        + n_i_blocks * d_model * hidden_pad * w_item    # W1
                        + n_i_blocks * hidden_pad * d_model * w_item    # W2
                        + n_i_blocks * (hidden_pad + d_model) * 4       # biases
                        + n_pad * d_model * o_item),                    # out
    )

    # Working set: double-buffered x/out/W1/W2 blocks + f32 accumulator + biases.
    vmem_need = (2 * bm * d_model * w_item
                 + 2 * bm * d_model * o_item
                 + bm * d_model * 4
                 + 2 * d_model * bh * w_item
                 + 2 * bh * d_model * w_item
                 + 2 * (bh + d_model) * 4)
    vmem_limit = int(min(vmem_cap_bytes,
                         max(32 * 1024 * 1024, int(vmem_need * 1.25) + (4 << 20))))

    out2d = pl.pallas_call(
        _ffn_kernel,
        out_shape=jax.ShapeDtypeStruct((n_pad, d_model), x.dtype),
        grid_spec=pltpu.PrefetchScalarGridSpec(
            num_scalar_prefetch=0,
            grid=grid,
            in_specs=[
                pl.BlockSpec((bm, d_model), lambda i, k: (i, 0)),      # x rows
                pl.BlockSpec((d_model, bh), lambda i, k: (0, k)),      # W1 slab
                pl.BlockSpec((1, bh), lambda i, k: (0, k)),            # b1 slab
                pl.BlockSpec((bh, d_model), lambda i, k: (k, 0)),      # W2 slab
                pl.BlockSpec((1, d_model), lambda i, k: (0, 0)),       # b2
            ],
            out_specs=pl.BlockSpec((bm, d_model), lambda i, k: (i, 0)),
            scratch_shapes=[pltpu.VMEM((bm, d_model), jnp.float32)],
        ),
        compiler_params=pltpu.CompilerParams(
            dimension_semantics=("parallel", "arbitrary"),
            vmem_limit_bytes=vmem_limit,
        ),
        cost_estimate=cost,
    )(x2d, w1c, b1_2d, w2c, b2_2d)

    return out2d[:n].reshape(batch, seq, d_model)


# -------------------------------------------------------------- convenience wrapper
def feed_forward(x, w1_t, b1, w2_t, b2, *, compute_dtype=jnp.bfloat16,
                 block_m=None, block_h=None):
    """One-shot convenience: chip-aware tiles, prepare params, run the kernel.

    For repeated calls with the same weights, call prepare_params() once and
    then apply_feed_forward() directly (avoids re-casting/padding weights —
    an extra full HBM pass — on every call).
    """
    gen = _chip_generation()
    bm_d, bh_d, cap = _TILE_DEFAULTS.get(gen, _TILE_DEFAULTS["unknown"])
    block_m = block_m or bm_d
    block_h = block_h or bh_d

    # v7x: 2 TensorCores shard the parallel (row) axis — for small n make sure
    # there are >=2 row blocks instead of one oversized one.
    n = x.shape[0] * x.shape[1]
    if gen == "v7x" and n > 128 and _round_up(n, 16) <= block_m:
        block_m = max(128, _round_up(_round_up(n, 16) // 2, 16))

    params = prepare_params(w1_t, b1, w2_t, b2, block_h=block_h,
                            compute_dtype=compute_dtype)
    return apply_feed_forward(x, *params, block_m=block_m, block_h=block_h,
                              vmem_cap_bytes=cap)


# -------------------------------------------------------------------------- test utils
def init_params(key, d_model, hidden):
    """Deterministic init mimicking nn.Linear shapes (W: (out, in), b: (out,))."""
    k1, k2, k3, k4 = jax.random.split(key, 4)
    lim1 = 1.0 / jnp.sqrt(d_model)
    lim2 = 1.0 / jnp.sqrt(hidden)
    w1 = jax.random.uniform(k1, (hidden, d_model), jnp.float32, -lim1, lim1)
    b1 = jax.random.uniform(k2, (hidden,), jnp.float32, -lim1, lim1)
    w2 = jax.random.uniform(k3, (d_model, hidden), jnp.float32, -lim2, lim2)
    b2 = jax.random.uniform(k4, (d_model,), jnp.float32, -lim2, lim2)
    return w1, b1, w2, b2


if __name__ == "__main__":
    # Small but lane-dense shapes; hidden=1024 exercises the hidden-tiled
    # accumulation path (>=2 k-steps with block_h<=512).
    batch, seq, d_model, hidden = 2, 8, 128, 1024

    key = jax.random.PRNGKey(0)
    kx, kp = jax.random.split(key)
    x = jax.random.normal(kx, (batch, seq, d_model), jnp.float32)
    w1, b1, w2, b2 = init_params(kp, d_model, hidden)

    # Pure-JAX reference (eval-mode dropout = identity).
    ref = jnp.maximum(x @ w1.T + b1, 0.0) @ w2.T + b2

    # 1) f32 compute path via the one-shot wrapper: exact check.
    out_f32 = feed_forward(x, w1.T, b1, w2.T, b2, compute_dtype=jnp.float32)
    out_f32 = jax.block_until_ready(out_f32)
    assert out_f32.shape == (batch, seq, d_model)
    assert jnp.allclose(out_f32, ref, atol=1e-4, rtol=1e-4)

    # 2) Production path: prepare weights once (bf16 cast + pad), then apply.
    gen = _chip_generation()
    bm_d, bh_d, cap = _TILE_DEFAULTS.get(gen, _TILE_DEFAULTS["unknown"])
    prepared = prepare_params(w1.T, b1, w2.T, b2, block_h=bh_d,
                              compute_dtype=jnp.bfloat16)
    out_bf16 = apply_feed_forward(x, *prepared, block_m=bm_d, block_h=bh_d,
                                  vmem_cap_bytes=cap)
    out_bf16 = jax.block_until_ready(out_bf16)
    assert out_bf16.shape == (batch, seq, d_model)
    assert jnp.allclose(out_bf16, ref, atol=1e-1, rtol=5e-2)

    # Second call with the already-prepared params hits the jit cache and does
    # no weight rewrites.
    out_bf16_2 = jax.block_until_ready(
        apply_feed_forward(x, *prepared, block_m=bm_d, block_h=bh_d,
                           vmem_cap_bytes=cap))
    assert jnp.allclose(out_bf16_2, out_bf16)

    print("KERNEL_OK")
</pallas_src>

<mosaic_0001>
module attributes {stable_mosaic.version = 11 : i64} {
  func.func @_ffn_kernel(%arg0: i32, %arg1: i32, %arg2: memref<16x128xf32, #tpu.memory_space<vmem>>, %arg3: memref<128x512xf32, #tpu.memory_space<vmem>>, %arg4: memref<1x512xf32, #tpu.memory_space<vmem>>, %arg5: memref<512x128xf32, #tpu.memory_space<vmem>>, %arg6: memref<1x128xf32, #tpu.memory_space<vmem>>, %arg7: memref<16x128xf32, #tpu.memory_space<vmem>>, %arg8: memref<16x128xf32, #tpu.memory_space<vmem>>) attributes {dimension_semantics = [#tpu.dimension_semantics<parallel>, #tpu.dimension_semantics<arbitrary>], iteration_bounds = array<i64: 1, 2>, scalar_prefetch = 0 : i64, scratch_operands = 1 : i64, tpu.core_type = #tpu.core_type<tc>, window_params = [{transform_indices = @transform_0, window_bounds = array<i64: 16, 128>}, {transform_indices = @transform_1, window_bounds = array<i64: 128, 512>}, {transform_indices = @transform_2, window_bounds = array<i64: 1, 512>}, {transform_indices = @transform_3, window_bounds = array<i64: 512, 128>}, {pipeline_mode = #tpu.pipeline_mode<synchronous>, transform_indices = @transform_4, window_bounds = array<i64: 1, 128>}, {transform_indices = @transform_5, window_bounds = array<i64: 16, 128>}]} {
    %c0_i32 = arith.constant 0 : i32
    %0 = arith.cmpi eq, %arg1, %c0_i32 : i32
    %1 = arith.extui %0 : i1 to i32
    %c0_i32_0 = arith.constant 0 : i32
    %2 = arith.cmpi ne, %1, %c0_i32_0 : i32
    scf.if %2 {
      %cst_15 = arith.constant 0.000000e+00 : f32
      %19 = vector.broadcast %cst_15 : f32 to vector<16x128xf32>
      %c0_16 = arith.constant 0 : index
      %c0_17 = arith.constant 0 : index
      %20 = vector.load %arg8[%c0_16, %c0_17] : memref<16x128xf32, #tpu.memory_space<vmem>>, vector<16x128xf32>
      tpu.vector_store %arg8[%c0_16, %c0_17], %19 {strides = array<i32>} : memref<16x128xf32, #tpu.memory_space<vmem>>, vector<16x128xf32>,
    } else {
    }
    %c0 = arith.constant 0 : index
    %c0_1 = arith.constant 0 : index
    %3 = vector.load %arg2[%c0, %c0_1] : memref<16x128xf32, #tpu.memory_space<vmem>>, vector<16x128xf32>
    %c0_2 = arith.constant 0 : index
    %c0_3 = arith.constant 0 : index
    %4 = vector.load %arg3[%c0_2, %c0_3] : memref<128x512xf32, #tpu.memory_space<vmem>>, vector<128x512xf32>
    %cst = arith.constant dense<0.000000e+00> : vector<16x512xf32>
    %5 = tpu.matmul %3, %4, %cst {dimension_numbers = #tpu.dot_dimension_numbers<[1], [0], [0], [1], [0, 0, 1, 1], [], []>} : vector<16x128xf32>, vector<128x512xf32>, vector<16x512xf32> -> vector<16x512xf32>
    %c0_4 = arith.constant 0 : index
    %c0_5 = arith.constant 0 : index
    %6 = vector.load %arg4[%c0_4, %c0_5] : memref<1x512xf32, #tpu.memory_space<vmem>>, vector<1x512xf32>
    %7 = vector.broadcast %6 : vector<1x512xf32> to vector<16x512xf32>
    %8 = arith.addf %5, %7 : vector<16x512xf32>
    %cst_6 = arith.constant 0.000000e+00 : f32
    %9 = vector.broadcast %cst_6 : f32 to vector<16x512xf32>
    %10 = arith.maximumf %8, %9 : vector<16x512xf32>
    %c0_7 = arith.constant 0 : index
    %c0_8 = arith.constant 0 : index
    %11 = vector.load %arg8[%c0_7, %c0_8] : memref<16x128xf32, #tpu.memory_space<vmem>>, vector<16x128xf32>
    %c0_9 = arith.constant 0 : index
    %c0_10 = arith.constant 0 : index
    %12 = vector.load %arg5[%c0_9, %c0_10] : memref<512x128xf32, #tpu.memory_space<vmem>>, vector<512x128xf32>
    %cst_11 = arith.constant dense<0.000000e+00> : vector<16x128xf32>
    %13 = tpu.matmul %10, %12, %cst_11 {dimension_numbers = #tpu.dot_dimension_numbers<[1], [0], [0], [1], [0, 0, 1, 1], [], []>} : vector<16x512xf32>, vector<512x128xf32>, vector<16x128xf32> -> vector<16x128xf32>
    %14 = arith.addf %11, %13 : vector<16x128xf32>
    %c0_12 = arith.constant 0 : index
    %c0_13 = arith.constant 0 : index
    %15 = vector.load %arg8[%c0_12, %c0_13] : memref<16x128xf32, #tpu.memory_space<vmem>>, vector<16x128xf32>
    tpu.vector_store %arg8[%c0_12, %c0_13], %14 {strides = array<i32>} : memref<16x128xf32, #tpu.memory_space<vmem>>, vector<16x128xf32>,
    %c1_i32 = arith.constant 1 : i32
    %16 = arith.cmpi eq, %arg1, %c1_i32 : i32
    %17 = arith.extui %16 : i1 to i32
    %c0_i32_14 = arith.constant 0 : i32
    %18 = arith.cmpi ne, %17, %c0_i32_14 : i32
    scf.if %18 {
      %c0_15 = arith.constant 0 : index
      %c0_16 = arith.constant 0 : index
      %19 = vector.load %arg8[%c0_15, %c0_16] : memref<16x128xf32, #tpu.memory_space<vmem>>, vector<16x128xf32>
      %c0_17 = arith.constant 0 : index
      %c0_18 = arith.constant 0 : index
      %20 = vector.load %arg6[%c0_17, %c0_18] : memref<1x128xf32, #tpu.memory_space<vmem>>, vector<1x128xf32>
      %21 = vector.broadcast %20 : vector<1x128xf32> to vector<16x128xf32>
      %22 = arith.addf %19, %21 : vector<16x128xf32>
      %c0_19 = arith.constant 0 : index
      %c0_20 = arith.constant 0 : index
      %23 = vector.load %arg7[%c0_19, %c0_20] : memref<16x128xf32, #tpu.memory_space<vmem>>, vector<16x128xf32>
      tpu.vector_store %arg7[%c0_19, %c0_20], %22 {strides = array<i32>} : memref<16x128xf32, #tpu.memory_space<vmem>>, vector<16x128xf32>,
    } else {
    }
    return
  }
  func.func @transform_0(%arg0: i32, %arg1: i32) -> (i32, i32) {
    %c0_i32 = arith.constant 0 : i32
    %c0_i32_0 = arith.constant 0 : i32
    return %arg0, %c0_i32 : i32, i32
  }
  func.func @transform_1(%arg0: i32, %arg1: i32) -> (i32, i32) {
    %c0_i32 = arith.constant 0 : i32
    %c0_i32_0 = arith.constant 0 : i32
    return %c0_i32, %arg1 : i32, i32
  }
  func.func @transform_2(%arg0: i32, %arg1: i32) -> (i32, i32) {
    %c0_i32 = arith.constant 0 : i32
    %c0_i32_0 = arith.constant 0 : i32
    return %c0_i32, %arg1 : i32, i32
  }
  func.func @transform_3(%arg0: i32, %arg1: i32) -> (i32, i32) {
    %c0_i32 = arith.constant 0 : i32
    %c0_i32_0 = arith.constant 0 : i32
    return %arg1, %c0_i32 : i32, i32
  }
  func.func @transform_4(%arg0: i32, %arg1: i32) -> (i32, i32) {
    %c0_i32 = arith.constant 0 : i32
    %c0_i32_0 = arith.constant 0 : i32
    %c0_i32_1 = arith.constant 0 : i32
    return %c0_i32, %c0_i32_0 : i32, i32
  }
  func.func @transform_5(%arg0: i32, %arg1: i32) -> (i32, i32) {
    %c0_i32 = arith.constant 0 : i32
    %c0_i32_0 = arith.constant 0 : i32
    return %arg0, %c0_i32 : i32, i32
  }
}

</mosaic_0001>

<llo_original>
// kernel: apply_feed_forward.1
$region0: #{apply_feed_forward.1}
  #allocation0 [shape = 'u32[]', space=smem, size = 0x4, offset = 0x4, fixed_abs, tag = 'smem constant byte address 0x4 - core index']
  #allocation1 [shape = 'u32[144,128]{1,0:T(1,128)}', space=vmem, size = 0x12000, scoped, tag = 'internal scratch']
  #allocation2 [shape = 'f32[16,128]{1,0:T(8,128)}', space=vmem, size = 0x2000, scoped, tag = 'scratch operand']
  %s0 = inlined_call_operand.hbm [shape: f32[16,128], index: 0, kind: input, shape index: {}]
  %s1 = inlined_call_operand.hbm [shape: f32[128,1024], index: 1, kind: input, shape index: {}]
  %s2 = inlined_call_operand.vmem [shape: f32[1,1024], index: 2, kind: input, shape index: {}]
  %s3 = inlined_call_operand.hbm [shape: f32[1024,128], index: 3, kind: input, shape index: {}]
  %s4 = inlined_call_operand.vmem [shape: f32[1,128], index: 4, kind: input, shape index: {}]
  %s5 = inlined_call_operand.hbm [shape: f32[16,128], index: 5, kind: output, shape index: {}]
  %s6 = sld [smem:[#allocation0]]
  $region73: #{apply_feed_forward.1} parent=0
    _
  %s8 = ssub.s32 1, %s6
  %s9 = scalar_select 0, %s8, %s6
  $region1: #{apply_feed_forward.1} parent=0
    #allocation3 [shape = 'u8[8192]{0}', space=vmem, size = 0x2000, scoped, tag = 'input window, operand 0, single buffered']
    #allocation4 [shape = 's32[2]{0}', space=sflag, size = 0x8, scoped, tag = 'scoped memory for apply_feed_forward.1']
    #allocation5 [shape = 's32[2]{0}', space=sflag, size = 0x8, scoped, tag = 'scoped memory for apply_feed_forward.1']
    #allocation6 [shape = 'u8[524288]{0}', space=vmem, size = 0x80000, scoped, tag = 'input window, operand 1']
    #allocation7 [shape = 's32[2]{0}', space=sflag, size = 0x8, scoped, tag = 'scoped memory for apply_feed_forward.1']
    #allocation8 [shape = 'u8[524288]{0}', space=vmem, size = 0x80000, scoped, tag = 'input window, operand 3']
    #allocation9 [shape = 'u8[8192]{0}', space=vmem, size = 0x2000, scoped, tag = 'output window, operand 0, single buffered']
    %10 = vsyncpa [#allocation4], 0
    %11 = vsyncpa [#allocation7], 0
    %s12 = scalar_lea.sflag [#allocation7], 1
    %13 = vsyncpa %s12, 0
    %14 = vsyncpa [#allocation5], 0
    loop: start=0, step=1, limit=4
    $region2: #{apply_feed_forward.1} parent=1 // loop_pre_header
      _
    $region3: #{apply_feed_forward.1} parent=1 // loop_header
      %s16 = sphi 0, %s20
      %p17 = scmp.ge.s32.totalorder %s16, 4
      %s23 = sphi 0, %s35
      %s24 = sphi 0, %s31
      %s25 = sphi 0, %s23
      %s26 = sphi 0, %s24
      %s27 = sphi 0, %s25
      %s28 = sphi 0, %s26
      %s38 = sphi 0, %s40
      %s41 = sphi 0, %s38
      %s42 = sphi 0, %s41
      %s58 = sphi 0, %s42
      %s64 = sphi 0, %s66
      %s67 = sphi 0, %s64
      %s68 = sphi 0, %s67
      %s84 = sphi 0, %s68
      %s90 = sphi 0, %s92
      %s93 = sphi 0, %s90
      %s94 = sphi 0, %s93
      %s110 = sphi 0, %s94
      %s116 = sphi 0, %s118
      %s119 = sphi 0, %s116
      %s120 = sphi 0, %s119
      %s136 = sphi 0, %s120
      %s140 = sphi 0, %s140
      %s142 = sphi 0, %s140
      %s143 = sphi 0, %s142
      %s157 = sphi 0, %s143
      %s163 = sphi 0, %s165
      %s166 = sphi 0, %s163
      %s167 = sphi 0, %s166
      %s183 = sphi 0, %s167
    $region4: #{apply_feed_forward.1} parent=1 // loop_header_branch
      %19 = sbr.rel (%p17) target = $region8
    $region5: #{apply_feed_forward.1} parent=1 // loop_body
      %s21 = ssub.s32 %s16, 1
      %s22 = ssub.s32 %s16, 2
      %s29 = sadd.s32 1, %s24
      %p30 = scmp.ge.s32.totalorder %s29, 2
      %s31 = scalar_select %p30, 0, %s29
      %s32 = sadd.s32 1, %s23
      %s33 = scalar_select %p30, %s32, %s23
      %p34 = scmp.ge.s32.totalorder %s33, 1
      %s35 = scalar_select %p34, 0, %s33
      %s36 = ssub.s32 %s23, %s35
      %p37 = scmp.eq.s32.totalorder %s36, 0
      %s39 = sadd.s32 %s38, 1
      %s40 = scalar_select %p37, %s38, %s39
      %p43 = pneg %p37
      %p44 = scmp.eq.s32.totalorder %s16, 1
      %p45 = por %p43, %p44
      %p46 = scmp.ne.s32.totalorder %s38, %s41
      %p47 = scmp.eq.s32.totalorder %s16, 0
      %p48 = por %p46, %p47
      %p49 = scmp.ne.s32.totalorder %s38, %s41
      %p50 = scmp.eq.s32.totalorder %s21, 1
      %p51 = por %p49, %p50
      %p52 = scmp.ne.s32.totalorder %s41, %s42
      %p53 = scmp.eq.s32.totalorder %s21, 0
      %p54 = por %p52, %p53
      %p55 = scmp.ne.s32.totalorder %s41, %s42
      %p56 = scmp.eq.s32.totalorder %s22, 1
      %p57 = por %p55, %p56
      %p59 = scmp.ne.s32.totalorder %s42, %s58
      %p60 = scmp.eq.s32.totalorder %s22, 0
      %p61 = por %p59, %p60
      %s62 = ssub.s32 %s24, %s31
      %p63 = scmp.eq.s32.totalorder %s62, 0
      %s65 = sadd.s32 %s64, 1
      %s66 = scalar_select %p63, %s64, %s65
      %p69 = pneg %p63
      %p70 = scmp.eq.s32.totalorder %s16, 1
      %p71 = por %p69, %p70
      %p72 = scmp.ne.s32.totalorder %s64, %s67
      %p73 = scmp.eq.s32.totalorder %s16, 0
      %p74 = por %p72, %p73
      %p75 = scmp.ne.s32.totalorder %s64, %s67
      %p76 = scmp.eq.s32.totalorder %s21, 1
      %p77 = por %p75, %p76
      %p78 = scmp.ne.s32.totalorder %s67, %s68
      %p79 = scmp.eq.s32.totalorder %s21, 0
      %p80 = por %p78, %p79
      %p81 = scmp.ne.s32.totalorder %s67, %s68
      %p82 = scmp.eq.s32.totalorder %s22, 1
      %p83 = por %p81, %p82
      %p85 = scmp.ne.s32.totalorder %s68, %s84
      %p86 = scmp.eq.s32.totalorder %s22, 0
      %p87 = por %p85, %p86
      %s88 = ssub.s32 %s24, %s31
      %p89 = scmp.eq.s32.totalorder %s88, 0
      %s91 = sadd.s32 %s90, 1
      %s92 = scalar_select %p89, %s90, %s91
      %p95 = pneg %p89
      %p96 = scmp.eq.s32.totalorder %s16, 1
      %p97 = por %p95, %p96
      %p98 = scmp.ne.s32.totalorder %s90, %s93
      %p99 = scmp.eq.s32.totalorder %s16, 0
      %p100 = por %p98, %p99
      %p101 = scmp.ne.s32.totalorder %s90, %s93
      %p102 = scmp.eq.s32.totalorder %s21, 1
      %p103 = por %p101, %p102
      %p104 = scmp.ne.s32.totalorder %s93, %s94
      %p105 = scmp.eq.s32.totalorder %s21, 0
      %p106 = por %p104, %p105
      %p107 = scmp.ne.s32.totalorder %s93, %s94
      %p108 = scmp.eq.s32.totalorder %s22, 1
      %p109 = por %p107, %p108
      %p111 = scmp.ne.s32.totalorder %s94, %s110
      %p112 = scmp.eq.s32.totalorder %s22, 0
      %p113 = por %p111, %p112
      %s114 = ssub.s32 %s24, %s31
      %p115 = scmp.eq.s32.totalorder %s114, 0
      %s117 = sadd.s32 %s116, 1
      %s118 = scalar_select %p115, %s116, %s117
      %p121 = pneg %p115
      %p122 = scmp.eq.s32.totalorder %s16, 1
      %p123 = por %p121, %p122
      %p124 = scmp.ne.s32.totalorder %s116, %s119
      %p125 = scmp.eq.s32.totalorder %s16, 0
      %p126 = por %p124, %p125
      %p127 = scmp.ne.s32.totalorder %s116, %s119
      %p128 = scmp.eq.s32.totalorder %s21, 1
      %p129 = por %p127, %p128
      %p130 = scmp.ne.s32.totalorder %s119, %s120
      %p131 = scmp.eq.s32.totalorder %s21, 0
      %p132 = por %p130, %p131
      %p133 = scmp.ne.s32.totalorder %s119, %s120
      %p134 = scmp.eq.s32.totalorder %s22, 1
      %p135 = por %p133, %p134
      %p137 = scmp.ne.s32.totalorder %s120, %s136
      %p138 = scmp.eq.s32.totalorder %s22, 0
      %p139 = por %p137, %p138
      %s141 = sadd.s32 %s140, 1
      %p144 = scmp.eq.s32.totalorder %s16, 1
      %p145 = scmp.ne.s32.totalorder %s140, %s142
      %p146 = scmp.eq.s32.totalorder %s16, 0
      %p147 = por %p145, %p146
      %p148 = scmp.ne.s32.totalorder %s140, %s142
      %p149 = scmp.eq.s32.totalorder %s21, 1
      %p150 = por %p148, %p149
      %p151 = scmp.ne.s32.totalorder %s142, %s143
      %p152 = scmp.eq.s32.totalorder %s21, 0
      %p153 = por %p151, %p152
      %p154 = scmp.ne.s32.totalorder %s142, %s143
      %p155 = scmp.eq.s32.totalorder %s22, 1
      %p156 = por %p154, %p155
      %p158 = scmp.ne.s32.totalorder %s143, %s157
      %p159 = scmp.eq.s32.totalorder %s22, 0
      %p160 = por %p158, %p159
      %s161 = ssub.s32 %s23, %s35
      %p162 = scmp.eq.s32.totalorder %s161, 0
      %s164 = sadd.s32 %s163, 1
      %s165 = scalar_select %p162, %s163, %s164
      %p168 = pneg %p162
      %p169 = scmp.eq.s32.totalorder %s16, 1
      %p170 = por %p168, %p169
      %p171 = scmp.ne.s32.totalorder %s163, %s166
      %p172 = scmp.eq.s32.totalorder %s16, 0
      %p173 = por %p171, %p172
      %p174 = scmp.ne.s32.totalorder %s163, %s166
      %p175 = scmp.eq.s32.totalorder %s21, 1
      %p176 = por %p174, %p175
      %p177 = scmp.ne.s32.totalorder %s166, %s167
      %p178 = scmp.eq.s32.totalorder %s21, 0
      %p179 = por %p177, %p178
      %p180 = scmp.ne.s32.totalorder %s166, %s167
      %p181 = scmp.eq.s32.totalorder %s22, 1
      %p182 = por %p180, %p181
      %p184 = scmp.ne.s32.totalorder %s167, %s183
      %p185 = scmp.eq.s32.totalorder %s22, 0
      %p186 = por %p184, %p185
      %p187 = scmp.le.s32.totalorder 1, %s16
      %p188 = scmp.lt.s32.totalorder %s16, 3
      %p189 = pnand %p187, %p188
      %p190 = pneg %p189
      // Predicated region
      $region9: #{apply_feed_forward.1} parent=5 // pred_check
        _
      $region10: #{apply_feed_forward.1} parent=5 // pred_check_branch
        %192 = sbr.rel (%p189) target = $region12
      $region11: #{apply_feed_forward.1} parent=5 // pred_region
        %s193 = ssub.s32 %s16, 1
        // Predicated region
        $region13: #{apply_feed_forward.1} parent=11 // pred_check
          %p194 = pneg %p54
        $region14: #{apply_feed_forward.1} parent=11 // pred_check_branch
          %196 = sbr.rel (%p194) target = $region16
        $region15: #{apply_feed_forward.1} parent=11 // pred_region
          %s197 = smul.u32 2, %s25
          %s199 = ssub.s32 256, 256
          %200 = vsyncadd [#allocation4], %s199
          %s201 = smul.addr %s197, 128
          %s202 = scalar_lea.hbm %s0, %s201
          %s203 = sshll.u32 [#allocation3], 4
          %s204 = int_to_ptr.vmem [resolvable:$true] %s203
          %209 = dma.hbm_to_vmem [thread:$0]  %s202, 256, %s204, [#allocation4], 128, 128, 8
        $region16: #{apply_feed_forward.1} parent=11 // pred_fallthru
          _
        // Predicated region
        $region17: #{apply_feed_forward.1} parent=11 // pred_check
          %p210 = pneg %p153
        $region18: #{apply_feed_forward.1} parent=11 // pred_check_branch
          %212 = sbr.rel (%p210) target = $region20
        $region19: #{apply_feed_forward.1} parent=11 // pred_region
          _
        $region20: #{apply_feed_forward.1} parent=11 // pred_fallthru
          _
      $region12: #{apply_feed_forward.1} parent=5 // pred_fallthru
        _
      %p213 = scmp.lt.s32.totalorder %s16, 2
      // Predicated region
      $region21: #{apply_feed_forward.1} parent=5 // pred_check
        %p214 = pneg %p213
      $region22: #{apply_feed_forward.1} parent=5 // pred_check_branch
        %216 = sbr.rel (%p214) target = $region24
      $region23: #{apply_feed_forward.1} parent=5 // pred_region
        // Predicated region
        $region25: #{apply_feed_forward.1} parent=23 // pred_check
          %p217 = pneg %p74
        $region26: #{apply_feed_forward.1} parent=23 // pred_check_branch
          %219 = sbr.rel (%p217) target = $region28
        $region27: #{apply_feed_forward.1} parent=23 // pred_region
          %s220 = sand.u32 %s16, 1
          %s221 = scalar_lea.sflag [#allocation7], %s220
          %s222 = sand.u32 %s64, 1
          %s223 = smul.addr %s222, 512
          %s224 = scalar_lea.vmem [#allocation6], %s223
          %s225 = smul.u32 4, %s24
          %s227 = ssub.s32 8192, 8192
          %228 = vsyncadd %s221, %s227
          %s229 = smul.addr %s225, 128
          %s230 = scalar_lea.hbm %s1, %s229
          %s231 = sshll.u32 %s224, 4
          %s232 = int_to_ptr.vmem [resolvable:$true] %s231
          %237 = dma.hbm_to_vmem [thread:$0]  %s230, 8192, %s232, %s221, 1024, 512, 32
        $region28: #{apply_feed_forward.1} parent=23 // pred_fallthru
          _
        // Predicated region
        $region29: #{apply_feed_forward.1} parent=23 // pred_check
          %p238 = pneg %p100
        $region30: #{apply_feed_forward.1} parent=23 // pred_check_branch
          %240 = sbr.rel (%p238) target = $region32
        $region31: #{apply_feed_forward.1} parent=23 // pred_region
          %s241 = smul.u32 4, %s24
          %p242 = scmp.lt.s32.totalorder %s241, 7
          %s243 = scalar_select %p242, %s241, 7
          %s244 = scalar_lea.vmem %s2, %s243
          %s245 = smul.u32 4, %s24
        $region32: #{apply_feed_forward.1} parent=23 // pred_fallthru
          _
        // Predicated region
        $region33: #{apply_feed_forward.1} parent=23 // pred_check
          %p246 = pneg %p126
        $region34: #{apply_feed_forward.1} parent=23 // pred_check_branch
          %248 = sbr.rel (%p246) target = $region36
        $region35: #{apply_feed_forward.1} parent=23 // pred_region
          %s249 = sand.u32 %s16, 1
          %s250 = scalar_lea.sflag [#allocation7], %s249
          %s251 = sand.u32 %s116, 1
          %s252 = smul.addr %s251, 512
          %s253 = scalar_lea.vmem [#allocation8], %s252
          %s254 = smul.u32 64, %s24
          %s256 = ssub.s32 8192, 8192
          %257 = vsyncadd %s250, %s256
          %s258 = smul.addr %s254, 128
          %s259 = scalar_lea.hbm %s3, %s258
          %s260 = sshll.u32 %s253, 4
          %s261 = int_to_ptr.vmem [resolvable:$true] %s260
          %266 = dma.hbm_to_vmem [thread:$0]  %s259, 8192, %s261, %s250, 128, 128, 8
        $region36: #{apply_feed_forward.1} parent=23 // pred_fallthru
          _
      $region24: #{apply_feed_forward.1} parent=5 // pred_fallthru
        _
      %p267 = scmp.le.s32.totalorder 1, %s16
      %p268 = scmp.lt.s32.totalorder %s16, 3
      %p269 = pnand %p267, %p268
      %p270 = pneg %p269
      // Predicated region
      $region37: #{apply_feed_forward.1} parent=5 // pred_check
        _
      $region38: #{apply_feed_forward.1} parent=5 // pred_check_branch
        %272 = sbr.rel (%p269) target = $region40
      $region39: #{apply_feed_forward.1} parent=5 // pred_region
        %s273 = ssub.s32 %s16, 1
        // Predicated region
        $region41: #{apply_feed_forward.1} parent=39 // pred_check
          %p274 = pneg %p54
        $region42: #{apply_feed_forward.1} parent=39 // pred_check_branch
          %276 = sbr.rel (%p274) target = $region44
        $region43: #{apply_feed_forward.1} parent=39 // pred_region
          %277 = dma.done [#allocation4], 256
        $region44: #{apply_feed_forward.1} parent=39 // pred_fallthru
          _
        %s278 = sand.u32 %s21, 1
        %s279 = scalar_lea.sflag [#allocation7], %s278
        %s280 = sand.u32 %s67, 1
        %s281 = smul.addr %s280, 512
        %s282 = scalar_lea.vmem [#allocation6], %s281
        // Predicated region
        $region45: #{apply_feed_forward.1} parent=39 // pred_check
          %p283 = pneg %p80
        $region46: #{apply_feed_forward.1} parent=39 // pred_check_branch
          %285 = sbr.rel (%p283) target = $region48
        $region47: #{apply_feed_forward.1} parent=39 // pred_region
          %286 = dma.done %s279, 8192
        $region48: #{apply_feed_forward.1} parent=39 // pred_fallthru
          _
        %s287 = sand.u32 %s21, 1
        %s288 = scalar_lea.sflag [#allocation7], %s287
        %s289 = sand.u32 %s119, 1
        %s290 = smul.addr %s289, 512
        %s291 = scalar_lea.vmem [#allocation8], %s290
        // Predicated region
        $region49: #{apply_feed_forward.1} parent=39 // pred_check
          %p292 = pneg %p132
        $region50: #{apply_feed_forward.1} parent=39 // pred_check_branch
          %294 = sbr.rel (%p292) target = $region52
        $region51: #{apply_feed_forward.1} parent=39 // pred_region
          %295 = dma.done %s288, 8192
        $region52: #{apply_feed_forward.1} parent=39 // pred_fallthru
          _
        %p296 = pneg %p54
        %p297 = pneg %p51
        %s298 = sand.u32 %s21, 1
        %s299 = scalar_lea.sflag [#allocation7], %s298
        %s300 = sand.u32 %s67, 1
        %s301 = smul.addr %s300, 512
        %s302 = scalar_lea.vmem [#allocation6], %s301
        %p303 = pneg %p80
        %p304 = pneg %p77
        %s305 = smul.u32 4, %s26
        %p306 = scmp.lt.s32.totalorder %s305, 7
        %s307 = scalar_select %p306, %s305, 7
        %s308 = scalar_lea.vmem %s2, %s307
        %p309 = pneg %p106
        %p310 = pneg %p103
        %s311 = sand.u32 %s21, 1
        %s312 = scalar_lea.sflag [#allocation7], %s311
        %s313 = sand.u32 %s119, 1
        %s314 = smul.addr %s313, 512
        %s315 = scalar_lea.vmem [#allocation8], %s314
        %p316 = pneg %p132
        %p317 = pneg %p129
        %p318 = pneg %p153
        %p319 = pneg %p150
        %p320 = pneg %p179
        %p321 = pneg %p176
        %s322 = smul.u32 2, %s25
        %s323 = smul.u32 4, %s26
        %s324 = smul.u32 4, %s26
        %p325 = scmp.lt.s32.totalorder %s324, 7
        %s326 = scalar_select %p325, %s324, 7
        %s327 = scalar_lea.vmem %s2, %s326
        %s328 = smul.u32 4, %s26
        %s329 = smul.u32 64, %s26
        %s330 = smul.u32 2, %s25
        %p331 = scmp.eq.s32.totalorder %s26, 0
        // Predicated region
        $region53: #{apply_feed_forward.1} parent=39 // pred_check
          %p332 = pneg %p331
        $region54: #{apply_feed_forward.1} parent=39 // pred_check_branch
          %334 = sbr.rel (%p332) target = $region56
        $region55: #{apply_feed_forward.1} parent=39 // pred_region
          %335 = vst [vmem:[#allocation2] sm:$0xff] 0.0
          %336 = vst [vmem:[#allocation2 + $0x8] sm:$0xff] 0.0
        $region56: #{apply_feed_forward.1} parent=39 // pred_fallthru
          _
        %v337 = vld [vmem:[#allocation3] sm:$0xff]
        %v338 = vld [vmem:[#allocation3 + $0x8] sm:$0xff]
        %v339 = vld [vmem:[%s282] sm:$0xff]
        %v340 = vld [vmem:[%s282 + $0x8] sm:$0xff]
        %v341 = vld [vmem:[%s282 + $0x10] sm:$0xff]
        %v342 = vld [vmem:[%s282 + $0x18] sm:$0xff]
        %v343 = vld [vmem:[%s282 + $0x20] sm:$0xff]
        %v344 = vld [vmem:[%s282 + $0x28] sm:$0xff]
        %v345 = vld [vmem:[%s282 + $0x30] sm:$0xff]
        %v346 = vld [vmem:[%s282 + $0x38] sm:$0xff]
        %v347 = vld [vmem:[%s282 + $0x40] sm:$0xff]
        %v348 = vld [vmem:[%s282 + $0x48] sm:$0xff]
        %v349 = vld [vmem:[%s282 + $0x50] sm:$0xff]
        %v350 = vld [vmem:[%s282 + $0x58] sm:$0xff]
        %v351 = vld [vmem:[%s282 + $0x60] sm:$0xff]
        %v352 = vld [vmem:[%s282 + $0x68] sm:$0xff]
        %v353 = vld [vmem:[%s282 + $0x70] sm:$0xff]
        %v354 = vld [vmem:[%s282 + $0x78] sm:$0xff]
        %v355 = vld [vmem:[%s282 + $0x80] sm:$0xff]
        %v356 = vld [vmem:[%s282 + $0x88] sm:$0xff]
        %v357 = vld [vmem:[%s282 + $0x90] sm:$0xff]
        %v358 = vld [vmem:[%s282 + $0x98] sm:$0xff]
        %v359 = vld [vmem:[%s282 + $0xa0] sm:$0xff]
        %v360 = vld [vmem:[%s282 + $0xa8] sm:$0xff]
        %v361 = vld [vmem:[%s282 + $0xb0] sm:$0xff]
        %v362 = vld [vmem:[%s282 + $0xb8] sm:$0xff]
        %v363 = vld [vmem:[%s282 + $0xc0] sm:$0xff]
        %v364 = vld [vmem:[%s282 + $0xc8] sm:$0xff]
        %v365 = vld [vmem:[%s282 + $0xd0] sm:$0xff]
        %v366 = vld [vmem:[%s282 + $0xd8] sm:$0xff]
        %v367 = vld [vmem:[%s282 + $0xe0] sm:$0xff]
        %v368 = vld [vmem:[%s282 + $0xe8] sm:$0xff]
        %v369 = vld [vmem:[%s282 + $0xf0] sm:$0xff]
        %v370 = vld [vmem:[%s282 + $0xf8] sm:$0xff]
        %v371 = vld [vmem:[%s282 + $0x100] sm:$0xff]
        %v372 = vld [vmem:[%s282 + $0x108] sm:$0xff]
        %v373 = vld [vmem:[%s282 + $0x110] sm:$0xff]
        %v374 = vld [vmem:[%s282 + $0x118] sm:$0xff]
        %v375 = vld [vmem:[%s282 + $0x120] sm:$0xff]
        %v376 = vld [vmem:[%s282 + $0x128] sm:$0xff]
        %v377 = vld [vmem:[%s282 + $0x130] sm:$0xff]
        %v378 = vld [vmem:[%s282 + $0x138] sm:$0xff]
        %v379 = vld [vmem:[%s282 + $0x140] sm:$0xff]
        %v380 = vld [vmem:[%s282 + $0x148] sm:$0xff]
        %v381 = vld [vmem:[%s282 + $0x150] sm:$0xff]
        %v382 = vld [vmem:[%s282 + $0x158] sm:$0xff]
        %v383 = vld [vmem:[%s282 + $0x160] sm:$0xff]
        %v384 = vld [vmem:[%s282 + $0x168] sm:$0xff]
        %v385 = vld [vmem:[%s282 + $0x170] sm:$0xff]
        %v386 = vld [vmem:[%s282 + $0x178] sm:$0xff]
        %v387 = vld [vmem:[%s282 + $0x180] sm:$0xff]
        %v388 = vld [vmem:[%s282 + $0x188] sm:$0xff]
        %v389 = vld [vmem:[%s282 + $0x190] sm:$0xff]
        %v390 = vld [vmem:[%s282 + $0x198] sm:$0xff]
        %v391 = vld [vmem:[%s282 + $0x1a0] sm:$0xff]
        %v392 = vld [vmem:[%s282 + $0x1a8] sm:$0xff]
        %v393 = vld [vmem:[%s282 + $0x1b0] sm:$0xff]
        %v394 = vld [vmem:[%s282 + $0x1b8] sm:$0xff]
        %v395 = vld [vmem:[%s282 + $0x1c0] sm:$0xff]
        %v396 = vld [vmem:[%s282 + $0x1c8] sm:$0xff]
        %v397 = vld [vmem:[%s282 + $0x1d0] sm:$0xff]
        %v398 = vld [vmem:[%s282 + $0x1d8] sm:$0xff]
        %v399 = vld [vmem:[%s282 + $0x1e0] sm:$0xff]
        %v400 = vld [vmem:[%s282 + $0x1e8] sm:$0xff]
        %v401 = vld [vmem:[%s282 + $0x1f0] sm:$0xff]
        %v402 = vld [vmem:[%s282 + $0x1f8] sm:$0xff]
        %v403 = vld [vmem:[%s327] sm:$0xf]
        %v405 = vlaneseq
        %v406 = vshrl.u32 %v405, 7
        %v407 = vsub.s32 0, %v406
        %v408 = vrot.slane %v403, %v407
        %v409 = vlaneseq
        %v410 = vshrl.u32 %v409, 7
        %v411 = vsub.s32 1, %v410
        %v412 = vrot.slane %v403, %v411
        %v413 = vlaneseq
        %v414 = vshrl.u32 %v413, 7
        %v415 = vsub.s32 2, %v414
        %v416 = vrot.slane %v403, %v415
        %v417 = vlaneseq
        %v418 = vshrl.u32 %v417, 7
        %v419 = vsub.s32 3, %v418
        %v420 = vrot.slane %v403, %v419
        %425 = vmatprep.subr.mxu0 %v340
        %426 = vmatpush1.msra.mxu0 %v339
        %427 = vmatprep.subr.mxu0 %v344
        %428 = vmatpush1.msra.mxu0 %v343
        %429 = vmatprep.subr.mxu0 %v348
        %430 = vmatpush1.msra.mxu0 %v347
        %431 = vmatprep.subr.mxu0 %v352
        %432 = vmatpush1.msra.mxu0 %v351
        %433 = vmatprep.subr.mxu0 %v356
        %434 = vmatpush1.msra.mxu0 %v355
        %435 = vmatprep.subr.mxu0 %v360
        %436 = vmatpush1.msra.mxu0 %v359
        %437 = vmatprep.subr.mxu0 %v364
        %438 = vmatpush1.msra.mxu0 %v363
        %439 = vmatprep.subr.mxu0 %v368
        %440 = vmatpush1.msra.mxu0 %v367
        %441 = vmatprep.subr.mxu0 %v372
        %442 = vmatpush1.msra.mxu0 %v371
        %443 = vmatprep.subr.mxu0 %v376
        %444 = vmatpush1.msra.mxu0 %v375
        %445 = vmatprep.subr.mxu0 %v380
        %446 = vmatpush1.msra.mxu0 %v379
        %447 = vmatprep.subr.mxu0 %v384
        %448 = vmatpush1.msra.mxu0 %v383
        %449 = vmatprep.subr.mxu0 %v388
        %450 = vmatpush1.msra.mxu0 %v387
        %451 = vmatprep.subr.mxu0 %v392
        %452 = vmatpush1.msra.mxu0 %v391
        %453 = vmatprep.subr.mxu0 %v396
        %454 = vmatpush1.msra.mxu0 %v395
        %455 = vmatprep.subr.mxu0 %v400
        %456 = vmatpush1.msra.mxu0 %v399
        %457 = vmatprep.subr.mxu0 0.0
        %458 = vmatpush1.msra.mxu0 0.0
        %459 = vmatprep.subr.mxu0 0.0
        %460 = vmatpush1.msra.mxu0 0.0
        %461 = vmatprep.subr.mxu0 0.0
        %462 = vmatpush1.msra.mxu0 0.0
        %463 = vmatprep.subr.mxu0 0.0
        %464 = vmatpush1.msra.mxu0 0.0
        %465 = vmatprep.subr.mxu0 0.0
        %466 = vmatpush1.msra.mxu0 0.0
        %467 = vmatprep.subr.mxu0 0.0
        %468 = vmatpush1.msra.mxu0 0.0
        %469 = vmatprep.subr.mxu0 0.0
        %470 = vmatpush1.msra.mxu0 0.0
        %471 = vmatprep.subr.mxu0 0.0
        %472 = vmatpush1.msra.mxu0 0.0
        %473 = vmatprep.subr.mxu0 0.0
        %474 = vmatpush1.msra.mxu0 0.0
        %475 = vmatprep.subr.mxu0 0.0
        %476 = vmatpush1.msra.mxu0 0.0
        %477 = vmatprep.subr.mxu0 0.0
        %478 = vmatpush1.msra.mxu0 0.0
        %479 = vmatprep.subr.mxu0 0.0
        %480 = vmatpush1.msra.mxu0 0.0
        %481 = vmatprep.subr.mxu0 0.0
        %482 = vmatpush1.msra.mxu0 0.0
        %483 = vmatprep.subr.mxu0 0.0
        %484 = vmatpush1.msra.mxu0 0.0
        %485 = vmatprep.subr.mxu0 0.0
        %486 = vmatpush1.msra.mxu0 0.0
        %487 = vmatprep.subr.mxu0 0.0
        %488 = vmatpush1.msra.mxu0 0.0
        %489 = vmatprep.mubr.f32.mxu0 0.0
        %490 = vmatmul.mubr.f32.gmra.mrb[0].mxu0 %v337
        %v491 = vpop.f32.mrb[0].mxu0
        %v492 = vadd.f32 %v408, %v491
        %v493 = vpop.f32.mrb[0].mxu0
        %v494 = vadd.f32 %v412, %v493
        %495 = vmatprep.mubr.f32.mxu0 0.0
        %496 = vmatmul.mubr.f32.gmra.mrb[0].mxu0 %v338
        %v497 = vpop.f32.mrb[0].mxu0
        %v498 = vadd.f32 %v408, %v497
        %v499 = vpop.f32.mrb[0].mxu0
        %v500 = vadd.f32 %v412, %v499
        %501 = vdwg.mxu0
        %502 = vmatprep.subr.mxu0 %v342
        %503 = vmatpush1.msra.mxu0 %v341
        %504 = vmatprep.subr.mxu0 %v346
        %505 = vmatpush1.msra.mxu0 %v345
        %506 = vmatprep.subr.mxu0 %v350
        %507 = vmatpush1.msra.mxu0 %v349
        %508 = vmatprep.subr.mxu0 %v354
        %509 = vmatpush1.msra.mxu0 %v353
        %510 = vmatprep.subr.mxu0 %v358
        %511 = vmatpush1.msra.mxu0 %v357
        %512 = vmatprep.subr.mxu0 %v362
        %513 = vmatpush1.msra.mxu0 %v361
        %514 = vmatprep.subr.mxu0 %v366
        %515 = vmatpush1.msra.mxu0 %v365
        %516 = vmatprep.subr.mxu0 %v370
        %517 = vmatpush1.msra.mxu0 %v369
        %518 = vmatprep.subr.mxu0 %v374
        %519 = vmatpush1.msra.mxu0 %v373
        %520 = vmatprep.subr.mxu0 %v378
        %521 = vmatpush1.msra.mxu0 %v377
        %522 = vmatprep.subr.mxu0 %v382
        %523 = vmatpush1.msra.mxu0 %v381
        %524 = vmatprep.subr.mxu0 %v386
        %525 = vmatpush1.msra.mxu0 %v385
        %526 = vmatprep.subr.mxu0 %v390
        %527 = vmatpush1.msra.mxu0 %v389
        %528 = vmatprep.subr.mxu0 %v394
        %529 = vmatpush1.msra.mxu0 %v393
        %530 = vmatprep.subr.mxu0 %v398
        %531 = vmatpush1.msra.mxu0 %v397
        %532 = vmatprep.subr.mxu0 %v402
        %533 = vmatpush1.msra.mxu0 %v401
        %534 = vmatprep.subr.mxu0 0.0
        %535 = vmatpush1.msra.mxu0 0.0
        %536 = vmatprep.subr.mxu0 0.0
        %537 = vmatpush1.msra.mxu0 0.0
        %538 = vmatprep.subr.mxu0 0.0
        %539 = vmatpush1.msra.mxu0 0.0
        %540 = vmatprep.subr.mxu0 0.0
        %541 = vmatpush1.msra.mxu0 0.0
        %542 = vmatprep.subr.mxu0 0.0
        %543 = vmatpush1.msra.mxu0 0.0
        %544 = vmatprep.subr.mxu0 0.0
        %545 = vmatpush1.msra.mxu0 0.0
        %546 = vmatprep.subr.mxu0 0.0
        %547 = vmatpush1.msra.mxu0 0.0
        %548 = vmatprep.subr.mxu0 0.0
        %549 = vmatpush1.msra.mxu0 0.0
        %550 = vmatprep.subr.mxu0 0.0
        %551 = vmatpush1.msra.mxu0 0.0
        %552 = vmatprep.subr.mxu0 0.0
        %553 = vmatpush1.msra.mxu0 0.0
        %554 = vmatprep.subr.mxu0 0.0
        %555 = vmatpush1.msra.mxu0 0.0
        %556 = vmatprep.subr.mxu0 0.0
        %557 = vmatpush1.msra.mxu0 0.0
        %558 = vmatprep.subr.mxu0 0.0
        %559 = vmatpush1.msra.mxu0 0.0
        %560 = vmatprep.subr.mxu0 0.0
        %561 = vmatpush1.msra.mxu0 0.0
        %562 = vmatprep.subr.mxu0 0.0
        %563 = vmatpush1.msra.mxu0 0.0
        %564 = vmatprep.subr.mxu0 0.0
        %565 = vmatpush1.msra.mxu0 0.0
        %566 = vmatprep.mubr.f32.mxu0 0.0
        %567 = vmatmul.mubr.f32.gmra.mrb[0].mxu0 %v337
        %v568 = vpop.f32.mrb[0].mxu0
        %v569 = vadd.f32 %v416, %v568
        %v570 = vpop.f32.mrb[0].mxu0
        %v571 = vadd.f32 %v420, %v570
        %572 = vmatprep.mubr.f32.mxu0 0.0
        %573 = vmatmul.mubr.f32.gmra.mrb[0].mxu0 %v338
        %v574 = vpop.f32.mrb[0].mxu0
        %v575 = vadd.f32 %v416, %v574
        %v576 = vpop.f32.mrb[0].mxu0
        %v577 = vadd.f32 %v420, %v576
        %578 = vdwg.mxu0
        %v579 = vmax.f32 %v492, 0.0
        %v580 = vmax.f32 %v494, 0.0
        %v581 = vmax.f32 %v569, 0.0
        %v582 = vmax.f32 %v571, 0.0
        %v583 = vmax.f32 %v498, 0.0
        %v584 = vmax.f32 %v500, 0.0
        %v585 = vmax.f32 %v575, 0.0
        %v586 = vmax.f32 %v577, 0.0
        %v587 = vld [vmem:[#allocation2] sm:$0xff]
        %v588 = vld [vmem:[#allocation2 + $0x8] sm:$0xff]
        %v589 = vld [vmem:[%s291] sm:$0xff]
        %v590 = vld [vmem:[%s291 + $0x8] sm:$0xff]
        %v591 = vld [vmem:[%s291 + $0x10] sm:$0xff]
        %v592 = vld [vmem:[%s291 + $0x18] sm:$0xff]
        %v593 = vld [vmem:[%s291 + $0x20] sm:$0xff]
        %v594 = vld [vmem:[%s291 + $0x28] sm:$0xff]
        %v595 = vld [vmem:[%s291 + $0x30] sm:$0xff]
        %v596 = vld [vmem:[%s291 + $0x38] sm:$0xff]
        %v597 = vld [vmem:[%s291 + $0x40] sm:$0xff]
        %v598 = vld [vmem:[%s291 + $0x48] sm:$0xff]
        %v599 = vld [vmem:[%s291 + $0x50] sm:$0xff]
        %v600 = vld [vmem:[%s291 + $0x58] sm:$0xff]
        %v601 = vld [vmem:[%s291 + $0x60] sm:$0xff]
        %v602 = vld [vmem:[%s291 + $0x68] sm:$0xff]
        %v603 = vld [vmem:[%s291 + $0x70] sm:$0xff]
        %v604 = vld [vmem:[%s291 + $0x78] sm:$0xff]
        %v605 = vld [vmem:[%s291 + $0x80] sm:$0xff]
        %v606 = vld [vmem:[%s291 + $0x88] sm:$0xff]
        %v607 = vld [vmem:[%s291 + $0x90] sm:$0xff]
        %v608 = vld [vmem:[%s291 + $0x98] sm:$0xff]
        %v609 = vld [vmem:[%s291 + $0xa0] sm:$0xff]
        %v610 = vld [vmem:[%s291 + $0xa8] sm:$0xff]
        %v611 = vld [vmem:[%s291 + $0xb0] sm:$0xff]
        %v612 = vld [vmem:[%s291 + $0xb8] sm:$0xff]
        %v613 = vld [vmem:[%s291 + $0xc0] sm:$0xff]
        %v614 = vld [vmem:[%s291 + $0xc8] sm:$0xff]
        %v615 = vld [vmem:[%s291 + $0xd0] sm:$0xff]
        %v616 = vld [vmem:[%s291 + $0xd8] sm:$0xff]
        %v617 = vld [vmem:[%s291 + $0xe0] sm:$0xff]
        %v618 = vld [vmem:[%s291 + $0xe8] sm:$0xff]
        %v619 = vld [vmem:[%s291 + $0xf0] sm:$0xff]
        %v620 = vld [vmem:[%s291 + $0xf8] sm:$0xff]
        %v621 = vld [vmem:[%s291 + $0x100] sm:$0xff]
        %v622 = vld [vmem:[%s291 + $0x108] sm:$0xff]
        %v623 = vld [vmem:[%s291 + $0x110] sm:$0xff]
        %v624 = vld [vmem:[%s291 + $0x118] sm:$0xff]
        %v625 = vld [vmem:[%s291 + $0x120] sm:$0xff]
        %v626 = vld [vmem:[%s291 + $0x128] sm:$0xff]
        %v627 = vld [vmem:[%s291 + $0x130] sm:$0xff]
        %v628 = vld [vmem:[%s291 + $0x138] sm:$0xff]
        %v629 = vld [vmem:[%s291 + $0x140] sm:$0xff]
        %v630 = vld [vmem:[%s291 + $0x148] sm:$0xff]
        %v631 = vld [vmem:[%s291 + $0x150] sm:$0xff]
        %v632 = vld [vmem:[%s291 + $0x158] sm:$0xff]
        %v633 = vld [vmem:[%s291 + $0x160] sm:$0xff]
        %v634 = vld [vmem:[%s291 + $0x168] sm:$0xff]
        %v635 = vld [vmem:[%s291 + $0x170] sm:$0xff]
        %v636 = vld [vmem:[%s291 + $0x178] sm:$0xff]
        %v637 = vld [vmem:[%s291 + $0x180] sm:$0xff]
        %v638 = vld [vmem:[%s291 + $0x188] sm:$0xff]
        %v639 = vld [vmem:[%s291 + $0x190] sm:$0xff]
        %v640 = vld [vmem:[%s291 + $0x198] sm:$0xff]
        %v641 = vld [vmem:[%s291 + $0x1a0] sm:$0xff]
        %v642 = vld [vmem:[%s291 + $0x1a8] sm:$0xff]
        %v643 = vld [vmem:[%s291 + $0x1b0] sm:$0xff]
        %v644 = vld [vmem:[%s291 + $0x1b8] sm:$0xff]
        %v645 = vld [vmem:[%s291 + $0x1c0] sm:$0xff]
        %v646 = vld [vmem:[%s291 + $0x1c8] sm:$0xff]
        %v647 = vld [vmem:[%s291 + $0x1d0] sm:$0xff]
        %v648 = vld [vmem:[%s291 + $0x1d8] sm:$0xff]
        %v649 = vld [vmem:[%s291 + $0x1e0] sm:$0xff]
        %v650 = vld [vmem:[%s291 + $0x1e8] sm:$0xff]
        %v651 = vld [vmem:[%s291 + $0x1f0] sm:$0xff]
        %v652 = vld [vmem:[%s291 + $0x1f8] sm:$0xff]
        %653 = vmatprep.subr.mxu0 0.0
        %654 = vmatpush1.msra.mxu0 %v589
        %655 = vmatprep.subr.mxu0 0.0
        %656 = vmatpush1.msra.mxu0 %v590
        %657 = vmatprep.subr.mxu0 0.0
        %658 = vmatpush1.msra.mxu0 %v591
        %659 = vmatprep.subr.mxu0 0.0
        %660 = vmatpush1.msra.mxu0 %v592
        %661 = vmatprep.subr.mxu0 0.0
        %662 = vmatpush1.msra.mxu0 %v593
        %663 = vmatprep.subr.mxu0 0.0
        %664 = vmatpush1.msra.mxu0 %v594
        %665 = vmatprep.subr.mxu0 0.0
        %666 = vmatpush1.msra.mxu0 %v595
        %667 = vmatprep.subr.mxu0 0.0
        %668 = vmatpush1.msra.mxu0 %v596
        %669 = vmatprep.subr.mxu0 0.0
        %670 = vmatpush1.msra.mxu0 %v597
        %671 = vmatprep.subr.mxu0 0.0
        %672 = vmatpush1.msra.mxu0 %v598
        %673 = vmatprep.subr.mxu0 0.0
        %674 = vmatpush1.msra.mxu0 %v599
        %675 = vmatprep.subr.mxu0 0.0
        %676 = vmatpush1.msra.mxu0 %v600
        %677 = vmatprep.subr.mxu0 0.0
        %678 = vmatpush1.msra.mxu0 %v601
        %679 = vmatprep.subr.mxu0 0.0
        %680 = vmatpush1.msra.mxu0 %v602
        %681 = vmatprep.subr.mxu0 0.0
        %682 = vmatpush1.msra.mxu0 %v603
        %683 = vmatprep.subr.mxu0 0.0
        %684 = vmatpush1.msra.mxu0 %v604
        %685 = vmatprep.subr.mxu0 0.0
        %686 = vmatpush1.msra.mxu0 %v605
        %687 = vmatprep.subr.mxu0 0.0
        %688 = vmatpush1.msra.mxu0 %v606
        %689 = vmatprep.subr.mxu0 0.0
        %690 = vmatpush1.msra.mxu0 %v607
        %691 = vmatprep.subr.mxu0 0.0
        %692 = vmatpush1.msra.mxu0 %v608
        %693 = vmatprep.subr.mxu0 0.0
        %694 = vmatpush1.msra.mxu0 %v609
        %695 = vmatprep.subr.mxu0 0.0
        %696 = vmatpush1.msra.mxu0 %v610
        %697 = vmatprep.subr.mxu0 0.0
        %698 = vmatpush1.msra.mxu0 %v611
        %699 = vmatprep.subr.mxu0 0.0
        %700 = vmatpush1.msra.mxu0 %v612
        %701 = vmatprep.subr.mxu0 0.0
        %702 = vmatpush1.msra.mxu0 %v613
        %703 = vmatprep.subr.mxu0 0.0
        %704 = vmatpush1.msra.mxu0 %v614
        %705 = vmatprep.subr.mxu0 0.0
        %706 = vmatpush1.msra.mxu0 %v615
        %707 = vmatprep.subr.mxu0 0.0
        %708 = vmatpush1.msra.mxu0 %v616
        %709 = vmatprep.subr.mxu0 0.0
        %710 = vmatpush1.msra.mxu0 %v617
        %711 = vmatprep.subr.mxu0 0.0
        %712 = vmatpush1.msra.mxu0 %v618
        %713 = vmatprep.subr.mxu0 0.0
        %714 = vmatpush1.msra.mxu0 %v619
        %715 = vmatprep.subr.mxu0 0.0
        %716 = vmatpush1.msra.mxu0 %v620
        %717 = vmatprep.mubr.f32.mxu0 %v580
        %718 = vmatmul.mubr.f32.gmra.mrb[0].mxu0 %v579
        %v719 = vpop.f32.mrb[0].mxu0
        %v720 = vadd.f32 0.0, %v719
        %v721 = vpop.f32.mrb[0].mxu0
        %722 = vmatprep.mubr.f32.mxu0 %v584
        %723 = vmatmul.mubr.f32.gmra.mrb[0].mxu0 %v583
        %v724 = vpop.f32.mrb[0].mxu0
        %v725 = vadd.f32 0.0, %v724
        %v726 = vpop.f32.mrb[0].mxu0
        %727 = vdwg.mxu0
        %728 = vmatprep.subr.mxu0 0.0
        %729 = vmatpush1.msra.mxu0 %v621
        %730 = vmatprep.subr.mxu0 0.0
        %731 = vmatpush1.msra.mxu0 %v622
        %732 = vmatprep.subr.mxu0 0.0
        %733 = vmatpush1.msra.mxu0 %v623
        %734 = vmatprep.subr.mxu0 0.0
        %735 = vmatpush1.msra.mxu0 %v624
        %736 = vmatprep.subr.mxu0 0.0
        %737 = vmatpush1.msra.mxu0 %v625
        %738 = vmatprep.subr.mxu0 0.0
        %739 = vmatpush1.msra.mxu0 %v626
        %740 = vmatprep.subr.mxu0 0.0
        %741 = vmatpush1.msra.mxu0 %v627
        %742 = vmatprep.subr.mxu0 0.0
        %743 = vmatpush1.msra.mxu0 %v628
        %744 = vmatprep.subr.mxu0 0.0
        %745 = vmatpush1.msra.mxu0 %v629
        %746 = vmatprep.subr.mxu0 0.0
        %747 = vmatpush1.msra.mxu0 %v630
        %748 = vmatprep.subr.mxu0 0.0
        %749 = vmatpush1.msra.mxu0 %v631
        %750 = vmatprep.subr.mxu0 0.0
        %751 = vmatpush1.msra.mxu0 %v632
        %752 = vmatprep.subr.mxu0 0.0
        %753 = vmatpush1.msra.mxu0 %v633
        %754 = vmatprep.subr.mxu0 0.0
        %755 = vmatpush1.msra.mxu0 %v634
        %756 = vmatprep.subr.mxu0 0.0
        %757 = vmatpush1.msra.mxu0 %v635
        %758 = vmatprep.subr.mxu0 0.0
        %759 = vmatpush1.msra.mxu0 %v636
        %760 = vmatprep.subr.mxu0 0.0
        %761 = vmatpush1.msra.mxu0 %v637
        %762 = vmatprep.subr.mxu0 0.0
        %763 = vmatpush1.msra.mxu0 %v638
        %764 = vmatprep.subr.mxu0 0.0
        %765 = vmatpush1.msra.mxu0 %v639
        %766 = vmatprep.subr.mxu0 0.0
        %767 = vmatpush1.msra.mxu0 %v640
        %768 = vmatprep.subr.mxu0 0.0
        %769 = vmatpush1.msra.mxu0 %v641
        %770 = vmatprep.subr.mxu0 0.0
        %771 = vmatpush1.msra.mxu0 %v642
        %772 = vmatprep.subr.mxu0 0.0
        %773 = vmatpush1.msra.mxu0 %v643
        %774 = vmatprep.subr.mxu0 0.0
        %775 = vmatpush1.msra.mxu0 %v644
        %776 = vmatprep.subr.mxu0 0.0
        %777 = vmatpush1.msra.mxu0 %v645
        %778 = vmatprep.subr.mxu0 0.0
        %779 = vmatpush1.msra.mxu0 %v646
        %780 = vmatprep.subr.mxu0 0.0
        %781 = vmatpush1.msra.mxu0 %v647
        %782 = vmatprep.subr.mxu0 0.0
        %783 = vmatpush1.msra.mxu0 %v648
        %784 = vmatprep.subr.mxu0 0.0
        %785 = vmatpush1.msra.mxu0 %v649
        %786 = vmatprep.subr.mxu0 0.0
        %787 = vmatpush1.msra.mxu0 %v650
        %788 = vmatprep.subr.mxu0 0.0
        %789 = vmatpush1.msra.mxu0 %v651
        %790 = vmatprep.subr.mxu0 0.0
        %791 = vmatpush1.msra.mxu0 %v652
        %792 = vmatprep.mubr.f32.mxu0 %v582
        %793 = vmatmul.mubr.f32.gmra.mrb[0].mxu0 %v581
        %v794 = vpop.f32.mrb[0].mxu0
        %v795 = vadd.f32 %v720, %v794
        %v796 = vpop.f32.mrb[0].mxu0
        %797 = vmatprep.mubr.f32.mxu0 %v586
        %798 = vmatmul.mubr.f32.gmra.mrb[0].mxu0 %v585
        %v799 = vpop.f32.mrb[0].mxu0
        %v800 = vadd.f32 %v725, %v799
        %v801 = vpop.f32.mrb[0].mxu0
        %802 = vdwg.mxu0
        %v803 = vadd.f32 %v587, %v795
        %v804 = vadd.f32 %v588, %v800
        %805 = vst [vmem:[#allocation2] sm:$0xff] %v803
        %806 = vst [vmem:[#allocation2 + $0x8] sm:$0xff] %v804
        %p807 = scmp.eq.s32.totalorder %s26, 1
        // Predicated region
        $region57: #{apply_feed_forward.1} parent=39 // pred_check
          %p808 = pneg %p807
        $region58: #{apply_feed_forward.1} parent=39 // pred_check_branch
          %810 = sbr.rel (%p808) target = $region60
        $region59: #{apply_feed_forward.1} parent=39 // pred_region
          %v811 = vld [vmem:[#allocation2] sm:$0xff]
          %v812 = vld [vmem:[#allocation2 + $0x8] sm:$0xff]
          %v813 = vld [vmem:[%s4] sm:$0x1]
          %v815 = vlaneseq
          %v816 = vshrl.u32 %v815, 7
          %v817 = vsub.s32 0, %v816
          %v818 = vrot.slane %v813, %v817
          %v820 = vadd.f32 %v811, %v818
          %v821 = vadd.f32 %v812, %v818
          %822 = vst [vmem:[#allocation9] sm:$0xff] %v820
          %823 = vst [vmem:[#allocation9 + $0x8] sm:$0xff] %v821
        $region60: #{apply_feed_forward.1} parent=39 // pred_fallthru
          _
        // Predicated region
        $region61: #{apply_feed_forward.1} parent=39 // pred_check
          %p824 = pneg %p176
        $region62: #{apply_feed_forward.1} parent=39 // pred_check_branch
          %826 = sbr.rel (%p824) target = $region64
        $region63: #{apply_feed_forward.1} parent=39 // pred_region
          %s827 = smul.u32 2, %s25
          %s829 = ssub.s32 256, 256
          %830 = vsyncadd [#allocation5], %s829
          %s831 = smul.addr %s827, 128
          %s832 = scalar_lea.hbm %s5, %s831
          %s833 = sshll.u32 [#allocation9], 4
          %s834 = int_to_ptr.vmem [resolvable:$true] %s833
          %839 = dma.vmem_to_hbm [thread:$0]  %s834, 256, %s832, [#allocation5], 128, 128, 8
        $region64: #{apply_feed_forward.1} parent=39 // pred_fallthru
          _
        // Predicated region
        $region65: #{apply_feed_forward.1} parent=39 // pred_check
          %p840 = pneg %p176
        $region66: #{apply_feed_forward.1} parent=39 // pred_check_branch
          %842 = sbr.rel (%p840) target = $region68
        $region67: #{apply_feed_forward.1} parent=39 // pred_region
          %843 = dma.done [#allocation5], 256
        $region68: #{apply_feed_forward.1} parent=39 // pred_fallthru
          _
      $region40: #{apply_feed_forward.1} parent=5 // pred_fallthru
        _
      %p844 = scmp.le.s32.totalorder 2, %s16
      // Predicated region
      $region69: #{apply_feed_forward.1} parent=5 // pred_check
        %p845 = pneg %p844
      $region70: #{apply_feed_forward.1} parent=5 // pred_check_branch
        %847 = sbr.rel (%p845) target = $region72
      $region71: #{apply_feed_forward.1} parent=5 // pred_region
        %s848 = ssub.s32 %s16, 2
      $region72: #{apply_feed_forward.1} parent=5 // pred_fallthru
        _
    $region6: #{apply_feed_forward.1} parent=1 // loop_footer
      %s20 = sadd.s32 1, %s16
    $region7: #{apply_feed_forward.1} parent=1 // loop_footer_branch
      %15 = sbr.rel target = $region3
    $region8: #{apply_feed_forward.1} parent=1 // loop_exit
      _
    %849 = vsyncpa [#allocation4], 1
    %s850 = scalar_lea.sflag [#allocation4], 1
    %851 = vsyncpa %s850, 1
    %852 = vsyncpa [#allocation7], 1
    %s853 = scalar_lea.sflag [#allocation7], 1
    %854 = vsyncpa %s853, 1
    %855 = vsyncpa [#allocation5], 1
    %s856 = scalar_lea.sflag [#allocation5], 1
    %857 = vsyncpa %s856, 1

</llo_original>
